<compile_context>
chip_gen: v7x
topology: tpu7x:2x2x1
jax: 0.10.0
libtpu: 0.0.40
codegen_flags: <defaults>
</compile_context>

<pallas_src>
import functools
import math

import numpy as np

import jax
import jax.numpy as jnp
from jax.experimental import pallas as pl
from jax.experimental.pallas import tpu as pltpu


# ----------------------------- static resize weights --------------------------------

def _aa_bilinear_weights(in_size, out_size):
    """(out_size, in_size) row-stochastic matrix reproducing PyTorch's
    upsample_bilinear2d_aa (mode='bilinear', antialias=True, align_corners=False)."""
    scale = in_size / out_size
    support = scale if scale >= 1.0 else 1.0        # (interp_size/2) * max(scale, 1)
    invscale = 1.0 / support
    w = np.zeros((out_size, in_size), dtype=np.float64)
    for i in range(out_size):
        center = scale * (i + 0.5)
        xmin = max(int(center - support + 0.5), 0)          # trunc-toward-zero like C++
        xmax = min(int(center + support + 0.5), in_size)
        idx = np.arange(xmin, xmax, dtype=np.float64)
        vals = np.maximum(0.0, 1.0 - np.abs((idx - center + 0.5) * invscale))
        total = vals.sum()
        if total > 0.0:
            vals = vals / total
        w[i, xmin:xmax] = vals
    return w.astype(np.float32)


# ----------------------------------- kernel -----------------------------------------

def _resize_kernel(x_ref, wh_ref, wwt_ref, o_ref, t_ref):
    # x_ref  : (tb*H_in,  W_in)   block of image planes, planes stacked along rows
    # wh_ref : (H_out, H_in)      height-pass weights (resident across grid steps)
    # wwt_ref: (W_in,  W_out)     width-pass weights, already transposed
    # o_ref  : (tb*H_out, W_out)
    # t_ref  : (tb*H_in,  W_out)  f32 VMEM scratch (width-pass intermediate)
    h_out, h_in = wh_ref.shape
    tb = x_ref.shape[0] // h_in

    # ---- width pass: ONE big MXU matmul over all rows of all planes in the block ----
    t_ref[...] = jnp.dot(x_ref[...], wwt_ref[...], preferred_element_type=jnp.float32)

    wh = wh_ref[...].astype(jnp.float32)             # hoisted out of the loop

    # ---- height pass: per-plane (H_out,H_in)@(H_in,W_out) matmuls on VMEM data ------
    def body(b, carry):
        src = pl.multiple_of(b * h_in, h_in)
        dst = pl.multiple_of(b * h_out, h_out)
        t_plane = t_ref[pl.ds(src, h_in), :]
        o_ref[pl.ds(dst, h_out), :] = jnp.dot(
            wh, t_plane, preferred_element_type=jnp.float32).astype(o_ref.dtype)
        return carry

    jax.lax.fori_loop(0, tb, body, 0, unroll=(tb <= 8))


# ------------------------------- wrapper / tiling ------------------------------------

def _choose_block_planes(nc, h_in, w_in, h_out, w_out, in_bytes):
    """Number of whole image planes per grid step."""
    in_plane = in_bytes * h_in * w_in
    out_plane = in_bytes * h_out * w_out
    t_plane = 4 * h_in * w_out
    # Double-buffered in/out blocks + single scratch; 10 MiB payload stays well inside
    # the scoped-VMEM defaults on v5e (16 MiB), v6e (32 MiB) and v7x (32 of 64 MiB).
    budget = 10 * 1024 * 1024
    tb = max(1, budget // (2 * (in_plane + out_plane) + t_plane))
    tb = min(tb, 256)
    # >= 2 grid steps whenever possible so ("parallel",) can shard across TensorCores.
    tb = min(tb, max(1, (nc + 1) // 2))
    # Block row counts (tb*h_in and tb*h_out) must be multiples of 8 (sublane tiling)
    # unless they equal the full array extent; round tb to the needed multiple.
    m = math.lcm(8 // math.gcd(h_in, 8), 8 // math.gcd(h_out, 8))
    tb = max(m, (int(tb) // m) * m)
    return int(tb)


def upsample_ratio(x, ratio):
    """Equivalent of UpSampleRatio_(ratio)(x) for NCHW input."""
    if ratio == 1:
        return x

    n, c, h, w = x.shape
    h_out, w_out = int(h * ratio), int(w * ratio)

    wh = jnp.asarray(_aa_bilinear_weights(h, h_out))        # (H_out, H_in)
    wwt = jnp.asarray(_aa_bilinear_weights(w, w_out).T)     # (W_in,  W_out)

    nc = n * c
    in_bytes = jnp.dtype(x.dtype).itemsize
    tb = _choose_block_planes(nc, h, w, h_out, w_out, in_bytes)
    n_blocks = -(-nc // tb)
    nc_pad = n_blocks * tb

    xf = x.reshape(nc, h, w)
    if nc_pad != nc:
        xf = jnp.pad(xf, ((0, nc_pad - nc), (0, 0), (0, 0)))
    x2d = xf.reshape(nc_pad * h, w)                          # free, row-major reshape

    out2d = pl.pallas_call(
        _resize_kernel,
        out_shape=jax.ShapeDtypeStruct((nc_pad * h_out, w_out), x.dtype),
        grid=(n_blocks,),
        in_specs=[
            pl.BlockSpec((tb * h, w), lambda i: (i, 0)),
            pl.BlockSpec((h_out, h), lambda i: (0, 0)),
            pl.BlockSpec((w, w_out), lambda i: (0, 0)),
        ],
        out_specs=pl.BlockSpec((tb * h_out, w_out), lambda i: (i, 0)),
        scratch_shapes=[pltpu.VMEM((tb * h, w_out), jnp.float32)],
        compiler_params=pltpu.CompilerParams(dimension_semantics=("parallel",)),
    )(x2d, wh, wwt)

    out2d = out2d[: nc * h_out]
    return out2d.reshape(n, c, h_out, w_out)


# ------------------------------- pure-JAX reference ----------------------------------

def _reference_resize(x, ratio):
    n, c, h, w = x.shape
    h_out, w_out = int(h * ratio), int(w * ratio)
    wh = jnp.asarray(_aa_bilinear_weights(h, h_out))
    ww = jnp.asarray(_aa_bilinear_weights(w, w_out))
    y = jnp.einsum("oh,nchw,pw->ncop", wh, x.astype(jnp.float32), ww)
    return y.astype(x.dtype)


# --------------------------------------- main ----------------------------------------

if __name__ == "__main__":
    key = jax.random.PRNGKey(0)
    x = jax.random.normal(key, (2, 4, 16, 16), jnp.float32)   # NCHW like the PyTorch module

    down = jax.jit(functools.partial(upsample_ratio, ratio=0.5))(x)   # downscale (antialias)
    up = jax.jit(functools.partial(upsample_ratio, ratio=2.0))(x)     # upscale
    same = upsample_ratio(x, 1.0)                                     # identity branch
    jax.block_until_ready((down, up, same))

    assert down.shape == (2, 4, 8, 8), down.shape
    assert up.shape == (2, 4, 32, 32), up.shape
    assert same.shape == x.shape and bool(jnp.all(same == x))

    # Pallas result must match the plain-XLA separable-matmul reference.
    assert bool(jnp.allclose(down, _reference_resize(x, 0.5), atol=1e-5, rtol=1e-5))
    assert bool(jnp.allclose(up, _reference_resize(x, 2.0), atol=1e-5, rtol=1e-5))

    # Non-square planes exercise the asymmetric H/W paths.
    x_ns = jax.random.normal(jax.random.PRNGKey(1), (1, 3, 24, 16), jnp.float32)
    down_ns = upsample_ratio(x_ns, 0.5)
    assert down_ns.shape == (1, 3, 12, 8), down_ns.shape
    assert bool(jnp.allclose(down_ns, _reference_resize(x_ns, 0.5), atol=1e-5, rtol=1e-5))

    # Resizing a constant image must preserve the constant (weights are normalized).
    const = jnp.full((1, 3, 16, 16), 2.5, jnp.float32)
    assert bool(jnp.allclose(upsample_ratio(const, 0.5), 2.5, atol=1e-5))

    assert bool(jnp.isfinite(down).all()) and bool(jnp.isfinite(up).all())
    print("KERNEL_OK")
</pallas_src>

<mosaic_0001>
module attributes {stable_mosaic.version = 11 : i64} {
  func.func @_resize_kernel(%arg0: i32, %arg1: memref<64x16xf32, #tpu.memory_space<vmem>>, %arg2: memref<8x16xf32, #tpu.memory_space<vmem>>, %arg3: memref<16x8xf32, #tpu.memory_space<vmem>>, %arg4: memref<32x8xf32, #tpu.memory_space<vmem>>, %arg5: memref<64x8xf32, #tpu.memory_space<vmem>>) attributes {dimension_semantics = [#tpu.dimension_semantics<parallel>], iteration_bounds = array<i64: 2>, scalar_prefetch = 0 : i64, scratch_operands = 1 : i64, tpu.core_type = #tpu.core_type<tc>, window_params = [{transform_indices = @transform_0, window_bounds = array<i64: 64, 16>}, {pipeline_mode = #tpu.pipeline_mode<synchronous>, transform_indices = @transform_1, window_bounds = array<i64: 8, 16>}, {pipeline_mode = #tpu.pipeline_mode<synchronous>, transform_indices = @transform_2, window_bounds = array<i64: 16, 8>}, {transform_indices = @transform_3, window_bounds = array<i64: 32, 8>}]} {
    %c0 = arith.constant 0 : index
    %c0_0 = arith.constant 0 : index
    %0 = vector.load %arg1[%c0, %c0_0] : memref<64x16xf32, #tpu.memory_space<vmem>>, vector<64x16xf32>
    %c0_1 = arith.constant 0 : index
    %c0_2 = arith.constant 0 : index
    %1 = vector.load %arg3[%c0_1, %c0_2] : memref<16x8xf32, #tpu.memory_space<vmem>>, vector<16x8xf32>
    %cst = arith.constant dense<0.000000e+00> : vector<64x8xf32>
    %2 = tpu.matmul %0, %1, %cst {dimension_numbers = #tpu.dot_dimension_numbers<[1], [0], [0], [1], [0, 0, 1, 1], [], []>} : vector<64x16xf32>, vector<16x8xf32>, vector<64x8xf32> -> vector<64x8xf32>
    %c0_3 = arith.constant 0 : index
    %c0_4 = arith.constant 0 : index
    %3 = vector.load %arg5[%c0_3, %c0_4] : memref<64x8xf32, #tpu.memory_space<vmem>>, vector<64x8xf32>
    tpu.vector_store %arg5[%c0_3, %c0_4], %2 {strides = array<i32>} : memref<64x8xf32, #tpu.memory_space<vmem>>, vector<64x8xf32>,
    %c0_5 = arith.constant 0 : index
    %c0_6 = arith.constant 0 : index
    %4 = vector.load %arg2[%c0_5, %c0_6] : memref<8x16xf32, #tpu.memory_space<vmem>>, vector<8x16xf32>
    %c0_i32 = arith.constant 0 : i32
    %c16_i32 = arith.constant 16 : i32
    %5 = arith.muli %c0_i32, %c16_i32 : i32
    %6 = tpu.assume_multiple %5, 16 : i32
    %c8_i32 = arith.constant 8 : i32
    %7 = arith.muli %c0_i32, %c8_i32 : i32
    %8 = tpu.assume_multiple %7, 8 : i32
    %9 = arith.index_cast %6 : i32 to index
    %c0_7 = arith.constant 0 : index
    %10 = vector.load %arg5[%9, %c0_7] : memref<64x8xf32, #tpu.memory_space<vmem>>, vector<16x8xf32>
    %cst_8 = arith.constant dense<0.000000e+00> : vector<8x8xf32>
    %11 = tpu.matmul %4, %10, %cst_8 {dimension_numbers = #tpu.dot_dimension_numbers<[1], [0], [0], [1], [0, 0, 1, 1], [], []>} : vector<8x16xf32>, vector<16x8xf32>, vector<8x8xf32> -> vector<8x8xf32>
    %12 = arith.index_cast %8 : i32 to index
    %c0_9 = arith.constant 0 : index
    %13 = vector.load %arg4[%12, %c0_9] : memref<32x8xf32, #tpu.memory_space<vmem>>, vector<8x8xf32>
    tpu.vector_store %arg4[%12, %c0_9], %11 {strides = array<i32>} : memref<32x8xf32, #tpu.memory_space<vmem>>, vector<8x8xf32>,
    %c1_i32 = arith.constant 1 : i32
    %c16_i32_10 = arith.constant 16 : i32
    %14 = arith.muli %c1_i32, %c16_i32_10 : i32
    %15 = tpu.assume_multiple %14, 16 : i32
    %c8_i32_11 = arith.constant 8 : i32
    %16 = arith.muli %c1_i32, %c8_i32_11 : i32
    %17 = tpu.assume_multiple %16, 8 : i32
    %18 = arith.index_cast %15 : i32 to index
    %c0_12 = arith.constant 0 : index
    %19 = vector.load %arg5[%18, %c0_12] : memref<64x8xf32, #tpu.memory_space<vmem>>, vector<16x8xf32>
    %cst_13 = arith.constant dense<0.000000e+00> : vector<8x8xf32>
    %20 = tpu.matmul %4, %19, %cst_13 {dimension_numbers = #tpu.dot_dimension_numbers<[1], [0], [0], [1], [0, 0, 1, 1], [], []>} : vector<8x16xf32>, vector<16x8xf32>, vector<8x8xf32> -> vector<8x8xf32>
    %21 = arith.index_cast %17 : i32 to index
    %c0_14 = arith.constant 0 : index
    %22 = vector.load %arg4[%21, %c0_14] : memref<32x8xf32, #tpu.memory_space<vmem>>, vector<8x8xf32>
    tpu.vector_store %arg4[%21, %c0_14], %20 {strides = array<i32>} : memref<32x8xf32, #tpu.memory_space<vmem>>, vector<8x8xf32>,
    %c2_i32 = arith.constant 2 : i32
    %c16_i32_15 = arith.constant 16 : i32
    %23 = arith.muli %c2_i32, %c16_i32_15 : i32
    %24 = tpu.assume_multiple %23, 16 : i32
    %c8_i32_16 = arith.constant 8 : i32
    %25 = arith.muli %c2_i32, %c8_i32_16 : i32
    %26 = tpu.assume_multiple %25, 8 : i32
    %27 = arith.index_cast %24 : i32 to index
    %c0_17 = arith.constant 0 : index
    %28 = vector.load %arg5[%27, %c0_17] : memref<64x8xf32, #tpu.memory_space<vmem>>, vector<16x8xf32>
    %cst_18 = arith.constant dense<0.000000e+00> : vector<8x8xf32>
    %29 = tpu.matmul %4, %28, %cst_18 {dimension_numbers = #tpu.dot_dimension_numbers<[1], [0], [0], [1], [0, 0, 1, 1], [], []>} : vector<8x16xf32>, vector<16x8xf32>, vector<8x8xf32> -> vector<8x8xf32>
    %30 = arith.index_cast %26 : i32 to index
    %c0_19 = arith.constant 0 : index
    %31 = vector.load %arg4[%30, %c0_19] : memref<32x8xf32, #tpu.memory_space<vmem>>, vector<8x8xf32>
    tpu.vector_store %arg4[%30, %c0_19], %29 {strides = array<i32>} : memref<32x8xf32, #tpu.memory_space<vmem>>, vector<8x8xf32>,
    %c3_i32 = arith.constant 3 : i32
    %c16_i32_20 = arith.constant 16 : i32
    %32 = arith.muli %c3_i32, %c16_i32_20 : i32
    %33 = tpu.assume_multiple %32, 16 : i32
    %c8_i32_21 = arith.constant 8 : i32
    %34 = arith.muli %c3_i32, %c8_i32_21 : i32
    %35 = tpu.assume_multiple %34, 8 : i32
    %36 = arith.index_cast %33 : i32 to index
    %c0_22 = arith.constant 0 : index
    %37 = vector.load %arg5[%36, %c0_22] : memref<64x8xf32, #tpu.memory_space<vmem>>, vector<16x8xf32>
    %cst_23 = arith.constant dense<0.000000e+00> : vector<8x8xf32>
    %38 = tpu.matmul %4, %37, %cst_23 {dimension_numbers = #tpu.dot_dimension_numbers<[1], [0], [0], [1], [0, 0, 1, 1], [], []>} : vector<8x16xf32>, vector<16x8xf32>, vector<8x8xf32> -> vector<8x8xf32>
    %39 = arith.index_cast %35 : i32 to index
    %c0_24 = arith.constant 0 : index
    %40 = vector.load %arg4[%39, %c0_24] : memref<32x8xf32, #tpu.memory_space<vmem>>, vector<8x8xf32>
    tpu.vector_store %arg4[%39, %c0_24], %38 {strides = array<i32>} : memref<32x8xf32, #tpu.memory_space<vmem>>, vector<8x8xf32>,
    %c4_i32 = arith.constant 4 : i32
    return
  }
  func.func @transform_0(%arg0: i32) -> (i32, i32) {
    %c0_i32 = arith.constant 0 : i32
    %c0_i32_0 = arith.constant 0 : i32
    return %arg0, %c0_i32 : i32, i32
  }
  func.func @transform_1(%arg0: i32) -> (i32, i32) {
    %c0_i32 = arith.constant 0 : i32
    %c0_i32_0 = arith.constant 0 : i32
    %c0_i32_1 = arith.constant 0 : i32
    return %c0_i32, %c0_i32_0 : i32, i32
  }
  func.func @transform_2(%arg0: i32) -> (i32, i32) {
    %c0_i32 = arith.constant 0 : i32
    %c0_i32_0 = arith.constant 0 : i32
    %c0_i32_1 = arith.constant 0 : i32
    return %c0_i32, %c0_i32_0 : i32, i32
  }
  func.func @transform_3(%arg0: i32) -> (i32, i32) {
    %c0_i32 = arith.constant 0 : i32
    %c0_i32_0 = arith.constant 0 : i32
    return %arg0, %c0_i32 : i32, i32
  }
}

</mosaic_0001>

<llo_original>
// kernel: upsample_ratio.1
$region0: #{upsample_ratio.1}
  #allocation0 [shape = 'u32[]', space=smem, size = 0x4, offset = 0x4, fixed_abs, tag = 'smem constant byte address 0x4 - core index']
  #allocation1 [shape = 'u32[144,128]{1,0:T(1,128)}', space=vmem, size = 0x12000, scoped, tag = 'internal scratch']
  #allocation2 [shape = 'f32[64,8]{1,0:T(8,128)}', space=vmem, size = 0x8000, scoped, tag = 'scratch operand']
  %s0 = inlined_call_operand.hbm [shape: f32[128,16], index: 0, kind: input, shape index: {}]
  %s1 = inlined_call_operand.hbm [shape: f32[8,16], index: 1, kind: input, shape index: {}]
  %s2 = inlined_call_operand.hbm [shape: f32[16,8], index: 2, kind: input, shape index: {}]
  %s3 = inlined_call_operand.hbm [shape: f32[64,8], index: 3, kind: output, shape index: {}]
  %s4 = sld [smem:[#allocation0]]
  $region57: #{upsample_ratio.1} parent=0
    _
  %s6 = ssub.s32 1, %s4
  %s7 = scalar_select 0, %s6, %s4
  $region1: #{upsample_ratio.1} parent=0
    #allocation3 [shape = 'u8[65536]{0}', space=vmem, size = 0x10000, scoped, tag = 'input window, operand 0']
    #allocation4 [shape = 's32[2]{0}', space=sflag, size = 0x8, scoped, tag = 'scoped memory for upsample_ratio.1']
    #allocation5 [shape = 's32[2]{0}', space=sflag, size = 0x8, scoped, tag = 'scoped memory for upsample_ratio.1']
    #allocation6 [shape = 'u8[4096]{0}', space=vmem, size = 0x1000, scoped, tag = 'input window, operand 1, single buffered']
    #allocation7 [shape = 's32[1]{0}', space=sflag, size = 0x4, scoped, tag = 'scoped memory for upsample_ratio.1']
    #allocation8 [shape = 'u8[8192]{0}', space=vmem, size = 0x2000, scoped, tag = 'input window, operand 2, single buffered']
    #allocation9 [shape = 'u8[32768]{0}', space=vmem, size = 0x8000, scoped, tag = 'output window, operand 0']
    %8 = vsyncpa [#allocation4], 0
    %s9 = scalar_lea.sflag [#allocation4], 1
    %10 = vsyncpa %s9, 0
    %11 = vsyncpa [#allocation7], 0
    %12 = vsyncpa [#allocation5], 0
    %s13 = scalar_lea.sflag [#allocation5], 1
    %14 = vsyncpa %s13, 0
    loop: start=0, step=1, limit=4
    $region2: #{upsample_ratio.1} parent=1 // loop_pre_header
      _
    $region3: #{upsample_ratio.1} parent=1 // loop_header
      %s16 = sphi 0, %s20
      %p17 = scmp.ge.s32.totalorder %s16, 4
      %s26 = sphi 0, %s28
      %s29 = sphi 0, %s26
      %s30 = sphi 0, %s29
      %s46 = sphi 0, %s30
      %s50 = sphi 0, %s50
      %s52 = sphi 0, %s50
      %s53 = sphi 0, %s52
      %s67 = sphi 0, %s53
      %s71 = sphi 0, %s71
      %s73 = sphi 0, %s71
      %s74 = sphi 0, %s73
      %s88 = sphi 0, %s74
      %s94 = sphi 0, %s96
      %s97 = sphi 0, %s94
      %s98 = sphi 0, %s97
      %s114 = sphi 0, %s98
    $region4: #{upsample_ratio.1} parent=1 // loop_header_branch
      %19 = sbr.rel (%p17) target = $region8
    $region5: #{upsample_ratio.1} parent=1 // loop_body
      %s21 = ssub.s32 %s16, 1
      %s22 = ssub.s32 %s16, 2
      %s23 = sadd.s32 %s16, 1
      %s24 = ssub.s32 %s16, %s23
      %p25 = scmp.eq.s32.totalorder %s24, 0
      %s27 = sadd.s32 %s26, 1
      %s28 = scalar_select %p25, %s26, %s27
      %p31 = pneg %p25
      %p32 = scmp.eq.s32.totalorder %s16, 1
      %p33 = por %p31, %p32
      %p34 = scmp.ne.s32.totalorder %s26, %s29
      %p35 = scmp.eq.s32.totalorder %s16, 0
      %p36 = por %p34, %p35
      %p37 = scmp.ne.s32.totalorder %s26, %s29
      %p38 = scmp.eq.s32.totalorder %s21, 1
      %p39 = por %p37, %p38
      %p40 = scmp.ne.s32.totalorder %s29, %s30
      %p41 = scmp.eq.s32.totalorder %s21, 0
      %p42 = por %p40, %p41
      %p43 = scmp.ne.s32.totalorder %s29, %s30
      %p44 = scmp.eq.s32.totalorder %s22, 1
      %p45 = por %p43, %p44
      %p47 = scmp.ne.s32.totalorder %s30, %s46
      %p48 = scmp.eq.s32.totalorder %s22, 0
      %p49 = por %p47, %p48
      %s51 = sadd.s32 %s50, 1
      %p54 = scmp.eq.s32.totalorder %s16, 1
      %p55 = scmp.ne.s32.totalorder %s50, %s52
      %p56 = scmp.eq.s32.totalorder %s16, 0
      %p57 = por %p55, %p56
      %p58 = scmp.ne.s32.totalorder %s50, %s52
      %p59 = scmp.eq.s32.totalorder %s21, 1
      %p60 = por %p58, %p59
      %p61 = scmp.ne.s32.totalorder %s52, %s53
      %p62 = scmp.eq.s32.totalorder %s21, 0
      %p63 = por %p61, %p62
      %p64 = scmp.ne.s32.totalorder %s52, %s53
      %p65 = scmp.eq.s32.totalorder %s22, 1
      %p66 = por %p64, %p65
      %p68 = scmp.ne.s32.totalorder %s53, %s67
      %p69 = scmp.eq.s32.totalorder %s22, 0
      %p70 = por %p68, %p69
      %s72 = sadd.s32 %s71, 1
      %p75 = scmp.eq.s32.totalorder %s16, 1
      %p76 = scmp.ne.s32.totalorder %s71, %s73
      %p77 = scmp.eq.s32.totalorder %s16, 0
      %p78 = por %p76, %p77
      %p79 = scmp.ne.s32.totalorder %s71, %s73
      %p80 = scmp.eq.s32.totalorder %s21, 1
      %p81 = por %p79, %p80
      %p82 = scmp.ne.s32.totalorder %s73, %s74
      %p83 = scmp.eq.s32.totalorder %s21, 0
      %p84 = por %p82, %p83
      %p85 = scmp.ne.s32.totalorder %s73, %s74
      %p86 = scmp.eq.s32.totalorder %s22, 1
      %p87 = por %p85, %p86
      %p89 = scmp.ne.s32.totalorder %s74, %s88
      %p90 = scmp.eq.s32.totalorder %s22, 0
      %p91 = por %p89, %p90
      %s92 = ssub.s32 %s16, %s23
      %p93 = scmp.eq.s32.totalorder %s92, 0
      %s95 = sadd.s32 %s94, 1
      %s96 = scalar_select %p93, %s94, %s95
      %p99 = pneg %p93
      %p100 = scmp.eq.s32.totalorder %s16, 1
      %p101 = por %p99, %p100
      %p102 = scmp.ne.s32.totalorder %s94, %s97
      %p103 = scmp.eq.s32.totalorder %s16, 0
      %p104 = por %p102, %p103
      %p105 = scmp.ne.s32.totalorder %s94, %s97
      %p106 = scmp.eq.s32.totalorder %s21, 1
      %p107 = por %p105, %p106
      %p108 = scmp.ne.s32.totalorder %s97, %s98
      %p109 = scmp.eq.s32.totalorder %s21, 0
      %p110 = por %p108, %p109
      %p111 = scmp.ne.s32.totalorder %s97, %s98
      %p112 = scmp.eq.s32.totalorder %s22, 1
      %p113 = por %p111, %p112
      %p115 = scmp.ne.s32.totalorder %s98, %s114
      %p116 = scmp.eq.s32.totalorder %s22, 0
      %p117 = por %p115, %p116
      %p118 = scmp.le.s32.totalorder 1, %s16
      %p119 = scmp.lt.s32.totalorder %s16, 3
      %p120 = pnand %p118, %p119
      %p121 = pneg %p120
      // Predicated region
      $region9: #{upsample_ratio.1} parent=5 // pred_check
        _
      $region10: #{upsample_ratio.1} parent=5 // pred_check_branch
        %123 = sbr.rel (%p120) target = $region12
      $region11: #{upsample_ratio.1} parent=5 // pred_region
        %s124 = ssub.s32 %s16, 1
        // Predicated region
        $region13: #{upsample_ratio.1} parent=11 // pred_check
          %p125 = pneg %p63
        $region14: #{upsample_ratio.1} parent=11 // pred_check_branch
          %127 = sbr.rel (%p125) target = $region16
        $region15: #{upsample_ratio.1} parent=11 // pred_region
          %s129 = ssub.s32 128, 128
          %130 = vsyncadd [#allocation7], %s129
          %s132 = sshll.u32 [#allocation6], 4
          %s133 = int_to_ptr.vmem [resolvable:$true] %s132
          %135 = dma.hbm_to_vmem [thread:$0]  %s1, 128, %s133, [#allocation7]
        $region16: #{upsample_ratio.1} parent=11 // pred_fallthru
          _
        // Predicated region
        $region17: #{upsample_ratio.1} parent=11 // pred_check
          %p136 = pneg %p84
        $region18: #{upsample_ratio.1} parent=11 // pred_check_branch
          %138 = sbr.rel (%p136) target = $region20
        $region19: #{upsample_ratio.1} parent=11 // pred_region
          %s140 = ssub.s32 256, 256
          %141 = vsyncadd [#allocation7], %s140
          %s142 = sshll.u32 [#allocation8], 4
          %s143 = int_to_ptr.vmem [resolvable:$true] %s142
          %148 = dma.hbm_to_vmem [thread:$0]  %s2, 256, %s143, [#allocation7], 128, 128, 8
        $region20: #{upsample_ratio.1} parent=11 // pred_fallthru
          _
      $region12: #{upsample_ratio.1} parent=5 // pred_fallthru
        _
      %p149 = scmp.lt.s32.totalorder %s16, 2
      // Predicated region
      $region21: #{upsample_ratio.1} parent=5 // pred_check
        %p150 = pneg %p149
      $region22: #{upsample_ratio.1} parent=5 // pred_check_branch
        %152 = sbr.rel (%p150) target = $region24
      $region23: #{upsample_ratio.1} parent=5 // pred_region
        // Predicated region
        $region25: #{upsample_ratio.1} parent=23 // pred_check
          %p153 = pneg %p36
        $region26: #{upsample_ratio.1} parent=23 // pred_check_branch
          %155 = sbr.rel (%p153) target = $region28
        $region27: #{upsample_ratio.1} parent=23 // pred_region
          %s156 = sand.u32 %s26, 1
          %s157 = scalar_lea.sflag [#allocation4], %s156
          %s158 = sand.u32 %s26, 1
          %s159 = smul.addr %s158, 64
          %s160 = scalar_lea.vmem [#allocation3], %s159
          %s161 = smul.u32 8, %s16
          %s163 = ssub.s32 1024, 1024
          %164 = vsyncadd %s157, %s163
          %s165 = smul.addr %s161, 128
          %s166 = scalar_lea.hbm %s0, %s165
          %s167 = sshll.u32 %s160, 4
          %s168 = int_to_ptr.vmem [resolvable:$true] %s167
          %173 = dma.hbm_to_vmem [thread:$0]  %s166, 1024, %s168, %s157, 128, 128, 8
        $region28: #{upsample_ratio.1} parent=23 // pred_fallthru
          _
      $region24: #{upsample_ratio.1} parent=5 // pred_fallthru
        _
      %p174 = scmp.le.s32.totalorder 1, %s16
      %p175 = scmp.lt.s32.totalorder %s16, 3
      %p176 = pnand %p174, %p175
      %p177 = pneg %p176
      // Predicated region
      $region29: #{upsample_ratio.1} parent=5 // pred_check
        _
      $region30: #{upsample_ratio.1} parent=5 // pred_check_branch
        %179 = sbr.rel (%p176) target = $region32
      $region31: #{upsample_ratio.1} parent=5 // pred_region
        %s180 = ssub.s32 %s16, 1
        %s181 = sand.u32 %s29, 1
        %s182 = scalar_lea.sflag [#allocation4], %s181
        %s183 = sand.u32 %s29, 1
        %s184 = smul.addr %s183, 64
        %s185 = scalar_lea.vmem [#allocation3], %s184
        // Predicated region
        $region33: #{upsample_ratio.1} parent=31 // pred_check
          %p186 = pneg %p42
        $region34: #{upsample_ratio.1} parent=31 // pred_check_branch
          %188 = sbr.rel (%p186) target = $region36
        $region35: #{upsample_ratio.1} parent=31 // pred_region
          %189 = dma.done %s182, 1024
        $region36: #{upsample_ratio.1} parent=31 // pred_fallthru
          _
        // Predicated region
        $region37: #{upsample_ratio.1} parent=31 // pred_check
          %p190 = pneg %p63
        $region38: #{upsample_ratio.1} parent=31 // pred_check_branch
          %192 = sbr.rel (%p190) target = $region40
        $region39: #{upsample_ratio.1} parent=31 // pred_region
          %193 = dma.done [#allocation7], 128
        $region40: #{upsample_ratio.1} parent=31 // pred_fallthru
          _
        // Predicated region
        $region41: #{upsample_ratio.1} parent=31 // pred_check
          %p194 = pneg %p84
        $region42: #{upsample_ratio.1} parent=31 // pred_check_branch
          %196 = sbr.rel (%p194) target = $region44
        $region43: #{upsample_ratio.1} parent=31 // pred_region
          %197 = dma.done [#allocation7], 256
        $region44: #{upsample_ratio.1} parent=31 // pred_fallthru
          _
        %s198 = sand.u32 %s29, 1
        %s199 = scalar_lea.sflag [#allocation4], %s198
        %s200 = sand.u32 %s29, 1
        %s201 = smul.addr %s200, 64
        %s202 = scalar_lea.vmem [#allocation3], %s201
        %p203 = pneg %p42
        %p204 = pneg %p39
        %p205 = pneg %p63
        %p206 = pneg %p60
        %p207 = pneg %p84
        %p208 = pneg %p81
        %p209 = pneg %p110
        %p210 = pneg %p107
        %s211 = sand.u32 %s97, 1
        %s212 = scalar_lea.sflag [#allocation5], %s211
        %s213 = sand.u32 %s97, 1
        %s214 = smul.addr %s213, 32
        %s215 = scalar_lea.vmem [#allocation9], %s214
        %s216 = smul.u32 8, %s21
        %s217 = smul.u32 4, %s21
        %v218 = vld [vmem:[%s185] sm:$0xff]
        %v219 = vld [vmem:[%s185 + $0x8] sm:$0xff]
        %v220 = vld [vmem:[%s185 + $0x10] sm:$0xff]
        %v221 = vld [vmem:[%s185 + $0x18] sm:$0xff]
        %v222 = vld [vmem:[%s185 + $0x20] sm:$0xff]
        %v223 = vld [vmem:[%s185 + $0x28] sm:$0xff]
        %v224 = vld [vmem:[%s185 + $0x30] sm:$0xff]
        %v225 = vld [vmem:[%s185 + $0x38] sm:$0xff]
        %v226 = vld [vmem:[#allocation8] sm:$0xff]
        %v227 = vld [vmem:[#allocation8 + $0x8] sm:$0xff]
        %vm228 = vcmask 130048
        %v230 = vsel %vm228, %v218, 0
        %v233 = vsel %vm228, %v219, 0
        %v236 = vsel %vm228, %v220, 0
        %v239 = vsel %vm228, %v221, 0
        %v242 = vsel %vm228, %v222, 0
        %v245 = vsel %vm228, %v223, 0
        %v248 = vsel %vm228, %v224, 0
        %v251 = vsel %vm228, %v225, 0
        %253 = vmatprep.subr.mxu0 0.0
        %254 = vmatpush1.msra.mxu0 %v226
        %255 = vmatprep.subr.mxu0 0.0
        %256 = vmatpush1.msra.mxu0 %v227
        %257 = vmatprep.subr.mxu0 0.0
        %258 = vmatpush1.msra.mxu0 0.0
        %259 = vmatprep.subr.mxu0 0.0
        %260 = vmatpush1.msra.mxu0 0.0
        %261 = vmatprep.subr.mxu0 0.0
        %262 = vmatpush1.msra.mxu0 0.0
        %263 = vmatprep.subr.mxu0 0.0
        %264 = vmatpush1.msra.mxu0 0.0
        %265 = vmatprep.subr.mxu0 0.0
        %266 = vmatpush1.msra.mxu0 0.0
        %267 = vmatprep.subr.mxu0 0.0
        %268 = vmatpush1.msra.mxu0 0.0
        %269 = vmatprep.subr.mxu0 0.0
        %270 = vmatpush1.msra.mxu0 0.0
        %271 = vmatprep.subr.mxu0 0.0
        %272 = vmatpush1.msra.mxu0 0.0
        %273 = vmatprep.subr.mxu0 0.0
        %274 = vmatpush1.msra.mxu0 0.0
        %275 = vmatprep.subr.mxu0 0.0
        %276 = vmatpush1.msra.mxu0 0.0
        %277 = vmatprep.subr.mxu0 0.0
        %278 = vmatpush1.msra.mxu0 0.0
        %279 = vmatprep.subr.mxu0 0.0
        %280 = vmatpush1.msra.mxu0 0.0
        %281 = vmatprep.subr.mxu0 0.0
        %282 = vmatpush1.msra.mxu0 0.0
        %283 = vmatprep.subr.mxu0 0.0
        %284 = vmatpush1.msra.mxu0 0.0
        %285 = vmatprep.subr.mxu0 0.0
        %286 = vmatpush1.msra.mxu0 0.0
        %287 = vmatprep.subr.mxu0 0.0
        %288 = vmatpush1.msra.mxu0 0.0
        %289 = vmatprep.subr.mxu0 0.0
        %290 = vmatpush1.msra.mxu0 0.0
        %291 = vmatprep.subr.mxu0 0.0
        %292 = vmatpush1.msra.mxu0 0.0
        %293 = vmatprep.subr.mxu0 0.0
        %294 = vmatpush1.msra.mxu0 0.0
        %295 = vmatprep.subr.mxu0 0.0
        %296 = vmatpush1.msra.mxu0 0.0
        %297 = vmatprep.subr.mxu0 0.0
        %298 = vmatpush1.msra.mxu0 0.0
        %299 = vmatprep.subr.mxu0 0.0
        %300 = vmatpush1.msra.mxu0 0.0
        %301 = vmatprep.subr.mxu0 0.0
        %302 = vmatpush1.msra.mxu0 0.0
        %303 = vmatprep.subr.mxu0 0.0
        %304 = vmatpush1.msra.mxu0 0.0
        %305 = vmatprep.subr.mxu0 0.0
        %306 = vmatpush1.msra.mxu0 0.0
        %307 = vmatprep.subr.mxu0 0.0
        %308 = vmatpush1.msra.mxu0 0.0
        %309 = vmatprep.subr.mxu0 0.0
        %310 = vmatpush1.msra.mxu0 0.0
        %311 = vmatprep.subr.mxu0 0.0
        %312 = vmatpush1.msra.mxu0 0.0
        %313 = vmatprep.subr.mxu0 0.0
        %314 = vmatpush1.msra.mxu0 0.0
        %315 = vmatprep.subr.mxu0 0.0
        %316 = vmatpush1.msra.mxu0 0.0
        %317 = vmatprep.mubr.f32.mxu0 0.0
        %318 = vmatmul.mubr.f32.gmra.mrb[0].mxu0 %v230
        %v319 = vpop.f32.mrb[0].mxu0
        %v320 = vadd.f32 0.0, %v319
        %v321 = vpop.f32.mrb[0].mxu0
        %322 = vmatprep.mubr.f32.mxu0 0.0
        %323 = vmatmul.mubr.f32.gmra.mrb[0].mxu0 %v233
        %v324 = vpop.f32.mrb[0].mxu0
        %v325 = vadd.f32 0.0, %v324
        %v326 = vpop.f32.mrb[0].mxu0
        %327 = vmatprep.mubr.f32.mxu0 0.0
        %328 = vmatmul.mubr.f32.gmra.mrb[0].mxu0 %v236
        %v329 = vpop.f32.mrb[0].mxu0
        %v330 = vadd.f32 0.0, %v329
        %v331 = vpop.f32.mrb[0].mxu0
        %332 = vmatprep.mubr.f32.mxu0 0.0
        %333 = vmatmul.mubr.f32.gmra.mrb[0].mxu0 %v239
        %v334 = vpop.f32.mrb[0].mxu0
        %v335 = vadd.f32 0.0, %v334
        %v336 = vpop.f32.mrb[0].mxu0
        %337 = vmatprep.mubr.f32.mxu0 0.0
        %338 = vmatmul.mubr.f32.gmra.mrb[0].mxu0 %v242
        %v339 = vpop.f32.mrb[0].mxu0
        %v340 = vadd.f32 0.0, %v339
        %v341 = vpop.f32.mrb[0].mxu0
        %342 = vmatprep.mubr.f32.mxu0 0.0
        %343 = vmatmul.mubr.f32.gmra.mrb[0].mxu0 %v245
        %v344 = vpop.f32.mrb[0].mxu0
        %v345 = vadd.f32 0.0, %v344
        %v346 = vpop.f32.mrb[0].mxu0
        %347 = vmatprep.mubr.f32.mxu0 0.0
        %348 = vmatmul.mubr.f32.gmra.mrb[0].mxu0 %v248
        %v349 = vpop.f32.mrb[0].mxu0
        %v350 = vadd.f32 0.0, %v349
        %v351 = vpop.f32.mrb[0].mxu0
        %352 = vmatprep.mubr.f32.mxu0 0.0
        %353 = vmatmul.mubr.f32.gmra.mrb[0].mxu0 %v251
        %v354 = vpop.f32.mrb[0].mxu0
        %v355 = vadd.f32 0.0, %v354
        %v356 = vpop.f32.mrb[0].mxu0
        %357 = vdwg.mxu0
        %vm358 = vcmask 64512
        %359 = vst.msk [vmem:[#allocation2] sm:$0xff] %vm358, %v320
        %360 = vst.msk [vmem:[#allocation2 + $0x8] sm:$0xff] %vm358, %v325
        %361 = vst.msk [vmem:[#allocation2 + $0x10] sm:$0xff] %vm358, %v330
        %362 = vst.msk [vmem:[#allocation2 + $0x18] sm:$0xff] %vm358, %v335
        %363 = vst.msk [vmem:[#allocation2 + $0x20] sm:$0xff] %vm358, %v340
        %364 = vst.msk [vmem:[#allocation2 + $0x28] sm:$0xff] %vm358, %v345
        %365 = vst.msk [vmem:[#allocation2 + $0x30] sm:$0xff] %vm358, %v350
        %366 = vst.msk [vmem:[#allocation2 + $0x38] sm:$0xff] %vm358, %v355
        %v367 = vld [vmem:[#allocation6] sm:$0xff]
        %v368 = vld [vmem:[#allocation2] sm:$0xff]
        %v369 = vld [vmem:[#allocation2 + $0x8] sm:$0xff]
        %v371 = vsel %vm228, %v367, 0
        %373 = vmatprep.subr.mxu0 0.0
        %374 = vmatpush1.msra.mxu0 %v368
        %375 = vmatprep.subr.mxu0 0.0
        %376 = vmatpush1.msra.mxu0 %v369
        %377 = vmatprep.subr.mxu0 0.0
        %378 = vmatpush1.msra.mxu0 0.0
        %379 = vmatprep.subr.mxu0 0.0
        %380 = vmatpush1.msra.mxu0 0.0
        %381 = vmatprep.subr.mxu0 0.0
        %382 = vmatpush1.msra.mxu0 0.0
        %383 = vmatprep.subr.mxu0 0.0
        %384 = vmatpush1.msra.mxu0 0.0
        %385 = vmatprep.subr.mxu0 0.0
        %386 = vmatpush1.msra.mxu0 0.0
        %387 = vmatprep.subr.mxu0 0.0
        %388 = vmatpush1.msra.mxu0 0.0
        %389 = vmatprep.subr.mxu0 0.0
        %390 = vmatpush1.msra.mxu0 0.0
        %391 = vmatprep.subr.mxu0 0.0
        %392 = vmatpush1.msra.mxu0 0.0
        %393 = vmatprep.subr.mxu0 0.0
        %394 = vmatpush1.msra.mxu0 0.0
        %395 = vmatprep.subr.mxu0 0.0
        %396 = vmatpush1.msra.mxu0 0.0
        %397 = vmatprep.subr.mxu0 0.0
        %398 = vmatpush1.msra.mxu0 0.0
        %399 = vmatprep.subr.mxu0 0.0
        %400 = vmatpush1.msra.mxu0 0.0
        %401 = vmatprep.subr.mxu0 0.0
        %402 = vmatpush1.msra.mxu0 0.0
        %403 = vmatprep.subr.mxu0 0.0
        %404 = vmatpush1.msra.mxu0 0.0
        %405 = vmatprep.subr.mxu0 0.0
        %406 = vmatpush1.msra.mxu0 0.0
        %407 = vmatprep.subr.mxu0 0.0
        %408 = vmatpush1.msra.mxu0 0.0
        %409 = vmatprep.subr.mxu0 0.0
        %410 = vmatpush1.msra.mxu0 0.0
        %411 = vmatprep.subr.mxu0 0.0
        %412 = vmatpush1.msra.mxu0 0.0
        %413 = vmatprep.subr.mxu0 0.0
        %414 = vmatpush1.msra.mxu0 0.0
        %415 = vmatprep.subr.mxu0 0.0
        %416 = vmatpush1.msra.mxu0 0.0
        %417 = vmatprep.subr.mxu0 0.0
        %418 = vmatpush1.msra.mxu0 0.0
        %419 = vmatprep.subr.mxu0 0.0
        %420 = vmatpush1.msra.mxu0 0.0
        %421 = vmatprep.subr.mxu0 0.0
        %422 = vmatpush1.msra.mxu0 0.0
        %423 = vmatprep.subr.mxu0 0.0
        %424 = vmatpush1.msra.mxu0 0.0
        %425 = vmatprep.subr.mxu0 0.0
        %426 = vmatpush1.msra.mxu0 0.0
        %427 = vmatprep.subr.mxu0 0.0
        %428 = vmatpush1.msra.mxu0 0.0
        %429 = vmatprep.subr.mxu0 0.0
        %430 = vmatpush1.msra.mxu0 0.0
        %431 = vmatprep.subr.mxu0 0.0
        %432 = vmatpush1.msra.mxu0 0.0
        %433 = vmatprep.subr.mxu0 0.0
        %434 = vmatpush1.msra.mxu0 0.0
        %435 = vmatprep.subr.mxu0 0.0
        %436 = vmatpush1.msra.mxu0 0.0
        %437 = vmatprep.mubr.f32.mxu0 0.0
        %438 = vmatmul.mubr.f32.gmra.mrb[0].mxu0 %v371
        %v439 = vpop.f32.mrb[0].mxu0
        %v440 = vadd.f32 0.0, %v439
        %v441 = vpop.f32.mrb[0].mxu0
        %442 = vdwg.mxu0
        %443 = vst.msk [vmem:[%s215] sm:$0xff] %vm358, %v440
        %s444 = scalar_lea.vmem [#allocation2], 16
        %v445 = vld [vmem:[%s444] sm:$0xff]
        %v446 = vld [vmem:[%s444 + $0x8] sm:$0xff]
        %447 = vmatprep.subr.mxu0 0.0
        %448 = vmatpush1.msra.mxu0 %v445
        %449 = vmatprep.subr.mxu0 0.0
        %450 = vmatpush1.msra.mxu0 %v446
        %451 = vmatprep.subr.mxu0 0.0
        %452 = vmatpush1.msra.mxu0 0.0
        %453 = vmatprep.subr.mxu0 0.0
        %454 = vmatpush1.msra.mxu0 0.0
        %455 = vmatprep.subr.mxu0 0.0
        %456 = vmatpush1.msra.mxu0 0.0
        %457 = vmatprep.subr.mxu0 0.0
        %458 = vmatpush1.msra.mxu0 0.0
        %459 = vmatprep.subr.mxu0 0.0
        %460 = vmatpush1.msra.mxu0 0.0
        %461 = vmatprep.subr.mxu0 0.0
        %462 = vmatpush1.msra.mxu0 0.0
        %463 = vmatprep.subr.mxu0 0.0
        %464 = vmatpush1.msra.mxu0 0.0
        %465 = vmatprep.subr.mxu0 0.0
        %466 = vmatpush1.msra.mxu0 0.0
        %467 = vmatprep.subr.mxu0 0.0
        %468 = vmatpush1.msra.mxu0 0.0
        %469 = vmatprep.subr.mxu0 0.0
        %470 = vmatpush1.msra.mxu0 0.0
        %471 = vmatprep.subr.mxu0 0.0
        %472 = vmatpush1.msra.mxu0 0.0
        %473 = vmatprep.subr.mxu0 0.0
        %474 = vmatpush1.msra.mxu0 0.0
        %475 = vmatprep.subr.mxu0 0.0
        %476 = vmatpush1.msra.mxu0 0.0
        %477 = vmatprep.subr.mxu0 0.0
        %478 = vmatpush1.msra.mxu0 0.0
        %479 = vmatprep.subr.mxu0 0.0
        %480 = vmatpush1.msra.mxu0 0.0
        %481 = vmatprep.subr.mxu0 0.0
        %482 = vmatpush1.msra.mxu0 0.0
        %483 = vmatprep.subr.mxu0 0.0
        %484 = vmatpush1.msra.mxu0 0.0
        %485 = vmatprep.subr.mxu0 0.0
        %486 = vmatpush1.msra.mxu0 0.0
        %487 = vmatprep.subr.mxu0 0.0
        %488 = vmatpush1.msra.mxu0 0.0
        %489 = vmatprep.subr.mxu0 0.0
        %490 = vmatpush1.msra.mxu0 0.0
        %491 = vmatprep.subr.mxu0 0.0
        %492 = vmatpush1.msra.mxu0 0.0
        %493 = vmatprep.subr.mxu0 0.0
        %494 = vmatpush1.msra.mxu0 0.0
        %495 = vmatprep.subr.mxu0 0.0
        %496 = vmatpush1.msra.mxu0 0.0
        %497 = vmatprep.subr.mxu0 0.0
        %498 = vmatpush1.msra.mxu0 0.0
        %499 = vmatprep.subr.mxu0 0.0
        %500 = vmatpush1.msra.mxu0 0.0
        %501 = vmatprep.subr.mxu0 0.0
        %502 = vmatpush1.msra.mxu0 0.0
        %503 = vmatprep.subr.mxu0 0.0
        %504 = vmatpush1.msra.mxu0 0.0
        %505 = vmatprep.subr.mxu0 0.0
        %506 = vmatpush1.msra.mxu0 0.0
        %507 = vmatprep.subr.mxu0 0.0
        %508 = vmatpush1.msra.mxu0 0.0
        %509 = vmatprep.subr.mxu0 0.0
        %510 = vmatpush1.msra.mxu0 0.0
        %511 = vmatprep.mubr.f32.mxu0 0.0
        %512 = vmatmul.mubr.f32.gmra.mrb[0].mxu0 %v371
        %v513 = vpop.f32.mrb[0].mxu0
        %v514 = vadd.f32 0.0, %v513
        %v515 = vpop.f32.mrb[0].mxu0
        %516 = vdwg.mxu0
        %s517 = scalar_lea.vmem %s215, 8 [#allocation9]
        %518 = vst.msk [vmem:[%s517] sm:$0xff] %vm358, %v514
        %s519 = scalar_lea.vmem [#allocation2], 32
        %v520 = vld [vmem:[%s519] sm:$0xff]
        %v521 = vld [vmem:[%s519 + $0x8] sm:$0xff]
        %522 = vmatprep.subr.mxu0 0.0
        %523 = vmatpush1.msra.mxu0 %v520
        %524 = vmatprep.subr.mxu0 0.0
        %525 = vmatpush1.msra.mxu0 %v521
        %526 = vmatprep.subr.mxu0 0.0
        %527 = vmatpush1.msra.mxu0 0.0
        %528 = vmatprep.subr.mxu0 0.0
        %529 = vmatpush1.msra.mxu0 0.0
        %530 = vmatprep.subr.mxu0 0.0
        %531 = vmatpush1.msra.mxu0 0.0
        %532 = vmatprep.subr.mxu0 0.0
        %533 = vmatpush1.msra.mxu0 0.0
        %534 = vmatprep.subr.mxu0 0.0
        %535 = vmatpush1.msra.mxu0 0.0
        %536 = vmatprep.subr.mxu0 0.0
        %537 = vmatpush1.msra.mxu0 0.0
        %538 = vmatprep.subr.mxu0 0.0
        %539 = vmatpush1.msra.mxu0 0.0
        %540 = vmatprep.subr.mxu0 0.0
        %541 = vmatpush1.msra.mxu0 0.0
        %542 = vmatprep.subr.mxu0 0.0
        %543 = vmatpush1.msra.mxu0 0.0
        %544 = vmatprep.subr.mxu0 0.0
        %545 = vmatpush1.msra.mxu0 0.0
        %546 = vmatprep.subr.mxu0 0.0
        %547 = vmatpush1.msra.mxu0 0.0
        %548 = vmatprep.subr.mxu0 0.0
        %549 = vmatpush1.msra.mxu0 0.0
        %550 = vmatprep.subr.mxu0 0.0
        %551 = vmatpush1.msra.mxu0 0.0
        %552 = vmatprep.subr.mxu0 0.0
        %553 = vmatpush1.msra.mxu0 0.0
        %554 = vmatprep.subr.mxu0 0.0
        %555 = vmatpush1.msra.mxu0 0.0
        %556 = vmatprep.subr.mxu0 0.0
        %557 = vmatpush1.msra.mxu0 0.0
        %558 = vmatprep.subr.mxu0 0.0
        %559 = vmatpush1.msra.mxu0 0.0
        %560 = vmatprep.subr.mxu0 0.0
        %561 = vmatpush1.msra.mxu0 0.0
        %562 = vmatprep.subr.mxu0 0.0
        %563 = vmatpush1.msra.mxu0 0.0
        %564 = vmatprep.subr.mxu0 0.0
        %565 = vmatpush1.msra.mxu0 0.0
        %566 = vmatprep.subr.mxu0 0.0
        %567 = vmatpush1.msra.mxu0 0.0
        %568 = vmatprep.subr.mxu0 0.0
        %569 = vmatpush1.msra.mxu0 0.0
        %570 = vmatprep.subr.mxu0 0.0
        %571 = vmatpush1.msra.mxu0 0.0
        %572 = vmatprep.subr.mxu0 0.0
        %573 = vmatpush1.msra.mxu0 0.0
        %574 = vmatprep.subr.mxu0 0.0
        %575 = vmatpush1.msra.mxu0 0.0
        %576 = vmatprep.subr.mxu0 0.0
        %577 = vmatpush1.msra.mxu0 0.0
        %578 = vmatprep.subr.mxu0 0.0
        %579 = vmatpush1.msra.mxu0 0.0
        %580 = vmatprep.subr.mxu0 0.0
        %581 = vmatpush1.msra.mxu0 0.0
        %582 = vmatprep.subr.mxu0 0.0
        %583 = vmatpush1.msra.mxu0 0.0
        %584 = vmatprep.subr.mxu0 0.0
        %585 = vmatpush1.msra.mxu0 0.0
        %586 = vmatprep.mubr.f32.mxu0 0.0
        %587 = vmatmul.mubr.f32.gmra.mrb[0].mxu0 %v371
        %v588 = vpop.f32.mrb[0].mxu0
        %v589 = vadd.f32 0.0, %v588
        %v590 = vpop.f32.mrb[0].mxu0
        %591 = vdwg.mxu0
        %s592 = scalar_lea.vmem %s215, 16 [#allocation9]
        %593 = vst.msk [vmem:[%s592] sm:$0xff] %vm358, %v589
        %s594 = scalar_lea.vmem [#allocation2], 48
        %v595 = vld [vmem:[%s594] sm:$0xff]
        %v596 = vld [vmem:[%s594 + $0x8] sm:$0xff]
        %597 = vmatprep.subr.mxu0 0.0
        %598 = vmatpush1.msra.mxu0 %v595
        %599 = vmatprep.subr.mxu0 0.0
        %600 = vmatpush1.msra.mxu0 %v596
        %601 = vmatprep.subr.mxu0 0.0
        %602 = vmatpush1.msra.mxu0 0.0
        %603 = vmatprep.subr.mxu0 0.0
        %604 = vmatpush1.msra.mxu0 0.0
        %605 = vmatprep.subr.mxu0 0.0
        %606 = vmatpush1.msra.mxu0 0.0
        %607 = vmatprep.subr.mxu0 0.0
        %608 = vmatpush1.msra.mxu0 0.0
        %609 = vmatprep.subr.mxu0 0.0
        %610 = vmatpush1.msra.mxu0 0.0
        %611 = vmatprep.subr.mxu0 0.0
        %612 = vmatpush1.msra.mxu0 0.0
        %613 = vmatprep.subr.mxu0 0.0
        %614 = vmatpush1.msra.mxu0 0.0
        %615 = vmatprep.subr.mxu0 0.0
        %616 = vmatpush1.msra.mxu0 0.0
        %617 = vmatprep.subr.mxu0 0.0
        %618 = vmatpush1.msra.mxu0 0.0
        %619 = vmatprep.subr.mxu0 0.0
        %620 = vmatpush1.msra.mxu0 0.0
        %621 = vmatprep.subr.mxu0 0.0
        %622 = vmatpush1.msra.mxu0 0.0
        %623 = vmatprep.subr.mxu0 0.0
        %624 = vmatpush1.msra.mxu0 0.0
        %625 = vmatprep.subr.mxu0 0.0
        %626 = vmatpush1.msra.mxu0 0.0
        %627 = vmatprep.subr.mxu0 0.0
        %628 = vmatpush1.msra.mxu0 0.0
        %629 = vmatprep.subr.mxu0 0.0
        %630 = vmatpush1.msra.mxu0 0.0
        %631 = vmatprep.subr.mxu0 0.0
        %632 = vmatpush1.msra.mxu0 0.0
        %633 = vmatprep.subr.mxu0 0.0
        %634 = vmatpush1.msra.mxu0 0.0
        %635 = vmatprep.subr.mxu0 0.0
        %636 = vmatpush1.msra.mxu0 0.0
        %637 = vmatprep.subr.mxu0 0.0
        %638 = vmatpush1.msra.mxu0 0.0
        %639 = vmatprep.subr.mxu0 0.0
        %640 = vmatpush1.msra.mxu0 0.0
        %641 = vmatprep.subr.mxu0 0.0
        %642 = vmatpush1.msra.mxu0 0.0
        %643 = vmatprep.subr.mxu0 0.0
        %644 = vmatpush1.msra.mxu0 0.0
        %645 = vmatprep.subr.mxu0 0.0
        %646 = vmatpush1.msra.mxu0 0.0
        %647 = vmatprep.subr.mxu0 0.0
        %648 = vmatpush1.msra.mxu0 0.0
        %649 = vmatprep.subr.mxu0 0.0
        %650 = vmatpush1.msra.mxu0 0.0
        %651 = vmatprep.subr.mxu0 0.0
        %652 = vmatpush1.msra.mxu0 0.0
        %653 = vmatprep.subr.mxu0 0.0
        %654 = vmatpush1.msra.mxu0 0.0
        %655 = vmatprep.subr.mxu0 0.0
        %656 = vmatpush1.msra.mxu0 0.0
        %657 = vmatprep.subr.mxu0 0.0
        %658 = vmatpush1.msra.mxu0 0.0
        %659 = vmatprep.subr.mxu0 0.0
        %660 = vmatpush1.msra.mxu0 0.0
        %661 = vmatprep.mubr.f32.mxu0 0.0
        %662 = vmatmul.mubr.f32.gmra.mrb[0].mxu0 %v371
        %v663 = vpop.f32.mrb[0].mxu0
        %v664 = vadd.f32 0.0, %v663
        %v665 = vpop.f32.mrb[0].mxu0
        %666 = vdwg.mxu0
        %s667 = scalar_lea.vmem %s215, 24 [#allocation9]
        %668 = vst.msk [vmem:[%s667] sm:$0xff] %vm358, %v664
        %s669 = sand.u32 %s97, 1
        %s670 = scalar_lea.sflag [#allocation5], %s669
        %s671 = sand.u32 %s97, 1
        %s672 = smul.addr %s671, 32
        %s673 = scalar_lea.vmem [#allocation9], %s672
        // Predicated region
        $region45: #{upsample_ratio.1} parent=31 // pred_check
          %p674 = pneg %p107
        $region46: #{upsample_ratio.1} parent=31 // pred_check_branch
          %676 = sbr.rel (%p674) target = $region48
        $region47: #{upsample_ratio.1} parent=31 // pred_region
          %s677 = smul.u32 4, %s21
          %s679 = ssub.s32 512, 512
          %680 = vsyncadd %s670, %s679
          %s681 = smul.addr %s677, 128
          %s682 = scalar_lea.hbm %s3, %s681
          %s683 = sshll.u32 %s673, 4
          %s684 = int_to_ptr.vmem [resolvable:$true] %s683
          %689 = dma.vmem_to_hbm [thread:$0]  %s684, 512, %s682, %s670, 128, 128, 8
        $region48: #{upsample_ratio.1} parent=31 // pred_fallthru
          _
      $region32: #{upsample_ratio.1} parent=5 // pred_fallthru
        _
      %p690 = scmp.le.s32.totalorder 2, %s16
      // Predicated region
      $region49: #{upsample_ratio.1} parent=5 // pred_check
        %p691 = pneg %p690
      $region50: #{upsample_ratio.1} parent=5 // pred_check_branch
        %693 = sbr.rel (%p691) target = $region52
      $region51: #{upsample_ratio.1} parent=5 // pred_region
        %s694 = ssub.s32 %s16, 2
        // Predicated region
        $region53: #{upsample_ratio.1} parent=51 // pred_check
          %p695 = pneg %p113
        $region54: #{upsample_ratio.1} parent=51 // pred_check_branch
          %697 = sbr.rel (%p695) target = $region56
        $region55: #{upsample_ratio.1} parent=51 // pred_region
          %s698 = sand.u32 %s98, 1
          %s699 = scalar_lea.sflag [#allocation5], %s698
          %s700 = sand.u32 %s98, 1
          %s701 = smul.addr %s700, 32
          %s702 = scalar_lea.vmem [#allocation9], %s701
          %703 = dma.done %s699, 512
        $region56: #{upsample_ratio.1} parent=51 // pred_fallthru
          _
      $region52: #{upsample_ratio.1} parent=5 // pred_fallthru
        _
    $region6: #{upsample_ratio.1} parent=1 // loop_footer
      %s20 = sadd.s32 1, %s16
    $region7: #{upsample_ratio.1} parent=1 // loop_footer_branch
      %15 = sbr.rel target = $region3
    $region8: #{upsample_ratio.1} parent=1 // loop_exit
      _
    %704 = vsyncpa [#allocation4], 1
    %s705 = scalar_lea.sflag [#allocation4], 1
    %706 = vsyncpa %s705, 1
    %707 = vsyncpa [#allocation7], 1
    %708 = vsyncpa [#allocation5], 1
    %s709 = scalar_lea.sflag [#allocation5], 1
    %710 = vsyncpa %s709, 1

</llo_original>
